<compile_context>
chip_gen: v6e
topology: v6e:2x2x1
jax: 0.10.0
libtpu: 0.0.40
codegen_flags: <defaults>
</compile_context>

<pallas_src>
import functools
import jax
import jax.numpy as jnp
from jax.experimental import pallas as pl
from jax.experimental.pallas import tpu as pltpu


def _round_up(x, m):
    return (x + m - 1) // m * m


# --------------------------------------------------------------------------
# Kernel A: weight fully resident in VMEM (constant block index), grid = rows.
# --------------------------------------------------------------------------
def fc_l2norm_resident_kernel(x_ref, w_ref, b_ref, scale_ref, o_ref, *, apply_norm):
    feats = jnp.dot(x_ref[...], w_ref[...], preferred_element_type=jnp.float32)
    feats = feats * scale_ref[0, 0] + b_ref[...]
    if apply_norm:
        # l2norm: norm = sqrt(sum(x^2)) + eps  (eps OUTSIDE the sqrt, like the ref)
        norm = jnp.sqrt(jnp.sum(feats * feats, axis=-1, keepdims=True)) + 1e-8
        feats = feats * pl.reciprocal(norm, approx=True)
    o_ref[...] = feats.astype(o_ref.dtype)


# --------------------------------------------------------------------------
# Kernel B: K-tiled fallback; accumulate directly into the f32 output block
# (its block index (i, 0) is resident across the "arbitrary" k axis).
# --------------------------------------------------------------------------
def fc_l2norm_ktiled_kernel(x_ref, w_ref, b_ref, scale_ref, o_ref, *, apply_norm):
    k = pl.program_id(1)

    @pl.when(k == 0)
    def _():
        o_ref[...] = jnp.zeros_like(o_ref)

    o_ref[...] += jnp.dot(x_ref[...], w_ref[...],
                          preferred_element_type=jnp.float32)

    @pl.when(k == pl.num_programs(1) - 1)
    def _():
        feats = o_ref[...] * scale_ref[0, 0] + b_ref[...]
        if apply_norm:
            norm = jnp.sqrt(jnp.sum(feats * feats, axis=-1, keepdims=True)) + 1e-8
            feats = feats * pl.reciprocal(norm, approx=True)
        o_ref[...] = feats


# --------------------------------------------------------------------------
# Wrapper: pad/cast, choose resident vs. K-tiled path, size VMEM budget.
# --------------------------------------------------------------------------
def fc_l2norm(x, w, b, scale, *, apply_norm=True):
    """x: [M, D], w: [D, E] (un-scaled V), b: [E], scale: scalar g/||V||_F."""
    M, D = x.shape
    E = w.shape[1]

    # lane/sublane-dense sizes (16-row granularity is bf16-sublane friendly;
    # 256-aligned row tiles fill the v6e/v7x 256x256 MXU)
    Dp = _round_up(D, 128)
    Ep = _round_up(E, 128)
    tm = min(256, _round_up(M, 16))
    Mp = _round_up(M, tm)

    # bf16 inputs for the MXU (accumulation is still f32 inside the kernel).
    xp = x.astype(jnp.bfloat16)
    if (Mp, Dp) != (M, D):
        xp = jnp.pad(xp, ((0, Mp - M), (0, Dp - D)))
    wp = w.astype(jnp.bfloat16)
    if (Dp, Ep) != (D, E):
        wp = jnp.pad(wp, ((0, Dp - D), (0, Ep - E)))
    bp = b.astype(jnp.float32).reshape(1, E)
    if Ep != E:
        bp = jnp.pad(bp, ((0, 0), (0, Ep - E)))
    sp = jnp.asarray(scale, jnp.float32).reshape(1, 1)

    # VMEM working-set estimates (assume double-buffering everywhere).
    w_bytes = Dp * Ep * 2
    x_tile_bytes = tm * Dp * 2
    o_tile_bytes = tm * Ep * 4
    resident_bytes = 2 * (w_bytes + x_tile_bytes + o_tile_bytes) + 2 * Ep * 4

    if resident_bytes <= 40 * 1024 * 1024:
        # ---- resident-weight path: weight DMA'd once for the whole grid ----
        grid = (Mp // tm,)
        in_specs = [
            pl.BlockSpec((tm, Dp), lambda i: (i, 0)),                # x row tile
            pl.BlockSpec((Dp, Ep), lambda i: (0, 0)),                # weight (invariant)
            pl.BlockSpec((1, Ep), lambda i: (0, 0)),                 # bias (invariant)
            pl.BlockSpec(memory_space=pltpu.MemorySpace.SMEM),       # scalar scale
        ]
        out_specs = pl.BlockSpec((tm, Ep), lambda i: (i, 0))
        kernel = functools.partial(fc_l2norm_resident_kernel, apply_norm=apply_norm)
        dim_sem = ("parallel",)
        vmem_limit = min(max(resident_bytes + (8 << 20), 32 << 20), 56 << 20)
    else:
        # ---- K-tiled fallback for very large weights ----
        tk = next(t for t in (512, 256, 128) if Dp % t == 0)
        grid = (Mp // tm, Dp // tk)
        in_specs = [
            pl.BlockSpec((tm, tk), lambda i, k: (i, k)),             # x tile
            pl.BlockSpec((tk, Ep), lambda i, k: (k, 0)),             # weight K-slab
            pl.BlockSpec((1, Ep), lambda i, k: (0, 0)),              # bias (invariant)
            pl.BlockSpec(memory_space=pltpu.MemorySpace.SMEM),       # scalar scale
        ]
        out_specs = pl.BlockSpec((tm, Ep), lambda i, k: (i, 0))
        kernel = functools.partial(fc_l2norm_ktiled_kernel, apply_norm=apply_norm)
        dim_sem = ("parallel", "arbitrary")
        ktiled_bytes = (2 * (tm * tk * 2) + 2 * (tk * Ep * 2)
                        + 2 * (tm * Ep * 4) + 2 * Ep * 4)
        vmem_limit = min(max(ktiled_bytes + (8 << 20), 32 << 20), 56 << 20)

    out = pl.pallas_call(
        kernel,
        out_shape=jax.ShapeDtypeStruct((Mp, Ep), jnp.float32),
        grid_spec=pltpu.PrefetchScalarGridSpec(
            num_scalar_prefetch=0,
            grid=grid,
            in_specs=in_specs,
            out_specs=out_specs,
        ),
        compiler_params=pltpu.CompilerParams(
            dimension_semantics=dim_sem,
            vmem_limit_bytes=vmem_limit,
        ),
    )(xp, wp, bp, sp)

    if (Mp, Ep) != (M, E):
        out = out[:M, :E]
    return out


# --------------------------------------------------------------------------
# Module-level forward (EncoderImageWeightNormPrecomp)
# --------------------------------------------------------------------------
def encoder_image_forward(params, images, no_imgnorm=False):
    v, g, b = params["v"], params["g"], params["b"]
    D, E = v.shape
    lead = images.shape[:-1]
    x = images.reshape(-1, D)
    # weight_norm(dim=None) scalar factor; precomputed once per call (f32).
    scale = g / jnp.sqrt(jnp.sum(v * v))
    feats = fc_l2norm(x, v, b, scale, apply_norm=not no_imgnorm)
    return feats.reshape(lead + (E,))


def init_params(key, img_dim, embed_size):
    k1, k2, k3 = jax.random.split(key, 3)
    bound = 1.0 / jnp.sqrt(jnp.float32(img_dim))
    # PyTorch Linear stores weight as [embed_size, img_dim]; we keep the
    # transposed [img_dim, embed_size] layout the MXU wants.
    v = jax.random.uniform(k1, (img_dim, embed_size), jnp.float32, -bound, bound)
    b = jax.random.uniform(k2, (embed_size,), jnp.float32, -bound, bound)
    # weight_norm init sets g = ||V||_F (so W == V at init); perturb g so the
    # scale path is actually exercised.
    g = jnp.sqrt(jnp.sum(v * v)) * (1.0 + 0.25 * jax.random.uniform(k3, ()))
    return {"v": v, "g": g, "b": b}


def reference_forward(params, images, no_imgnorm=False):
    """Pure-JAX f32 reference mirroring the PyTorch module."""
    v, g, b = params["v"], params["g"], params["b"]
    w = v * (g / jnp.sqrt(jnp.sum(v * v)))
    feats = jnp.dot(images, w, precision=jax.lax.Precision.HIGHEST) + b
    if not no_imgnorm:
        norm = jnp.sqrt(jnp.sum(feats * feats, axis=-1, keepdims=True)) + 1e-8
        feats = feats / norm
    return feats


# --------------------------------------------------------------------------
if __name__ == "__main__":
    img_dim, embed_size = 256, 128
    B, R = 2, 4  # batch of 2, 4 precomputed region features each -> images [2, 4, 256]

    key = jax.random.PRNGKey(0)
    key, k_img = jax.random.split(key)
    images = jax.random.normal(k_img, (B, R, img_dim), jnp.float32)

    params = init_params(key, img_dim, embed_size)

    # default path (with image l2 normalization); bf16 MXU -> looser tolerance
    out = jax.block_until_ready(encoder_image_forward(params, images))
    ref = reference_forward(params, images)
    assert out.shape == (B, R, embed_size)
    assert bool(jnp.all(jnp.isfinite(out)))
    assert jnp.allclose(out, ref, rtol=2e-2, atol=2e-2), float(jnp.abs(out - ref).max())

    # no_imgnorm path
    out2 = jax.block_until_ready(
        encoder_image_forward(params, images, no_imgnorm=True))
    ref2 = reference_forward(params, images, no_imgnorm=True)
    assert jnp.allclose(out2, ref2, rtol=2e-2, atol=2e-2), float(jnp.abs(out2 - ref2).max())

    print("KERNEL_OK")
</pallas_src>

<mosaic_0001>
module attributes {stable_mosaic.version = 11 : i64} {
  func.func @fc_l2norm_resident_kernel(%arg0: i32, %arg1: memref<16x256xbf16, #tpu.memory_space<vmem>>, %arg2: memref<256x128xbf16, #tpu.memory_space<vmem>>, %arg3: memref<1x128xf32, #tpu.memory_space<vmem>>, %arg4: memref<1x1xf32, #tpu.memory_space<smem>>, %arg5: memref<16x128xf32, #tpu.memory_space<vmem>>) attributes {dimension_semantics = [#tpu.dimension_semantics<parallel>], iteration_bounds = array<i64: 1>, scalar_prefetch = 0 : i64, scratch_operands = 0 : i64, tpu.core_type = #tpu.core_type<tc>, window_params = [{transform_indices = @transform_0, window_bounds = array<i64: 16, 256>}, {pipeline_mode = #tpu.pipeline_mode<synchronous>, transform_indices = @transform_1, window_bounds = array<i64: 256, 128>}, {pipeline_mode = #tpu.pipeline_mode<synchronous>, transform_indices = @transform_2, window_bounds = array<i64: 1, 128>}, {transform_indices = @transform_3, window_bounds = array<i64: 1, 1>}, {transform_indices = @transform_4, window_bounds = array<i64: 16, 128>}]} {
    %c0 = arith.constant 0 : index
    %c0_0 = arith.constant 0 : index
    %0 = vector.load %arg1[%c0, %c0_0] : memref<16x256xbf16, #tpu.memory_space<vmem>>, vector<16x256xbf16>
    %c0_1 = arith.constant 0 : index
    %c0_2 = arith.constant 0 : index
    %1 = vector.load %arg2[%c0_1, %c0_2] : memref<256x128xbf16, #tpu.memory_space<vmem>>, vector<256x128xbf16>
    %cst = arith.constant dense<0.000000e+00> : vector<16x128xf32>
    %2 = tpu.matmul %0, %1, %cst {dimension_numbers = #tpu.dot_dimension_numbers<[1], [0], [0], [1], [0, 0, 1, 1], [], []>} : vector<16x256xbf16>, vector<256x128xbf16>, vector<16x128xf32> -> vector<16x128xf32>
    %c0_3 = arith.constant 0 : index
    %c0_4 = arith.constant 0 : index
    %3 = memref.load %arg4[%c0_3, %c0_4] : memref<1x1xf32, #tpu.memory_space<smem>>
    %4 = vector.broadcast %3 : f32 to vector<16x128xf32>
    %5 = arith.mulf %2, %4 : vector<16x128xf32>
    %c0_5 = arith.constant 0 : index
    %c0_6 = arith.constant 0 : index
    %6 = vector.load %arg3[%c0_5, %c0_6] : memref<1x128xf32, #tpu.memory_space<vmem>>, vector<1x128xf32>
    %7 = vector.broadcast %6 : vector<1x128xf32> to vector<16x128xf32>
    %8 = arith.addf %5, %7 : vector<16x128xf32>
    %9 = arith.mulf %8, %8 : vector<16x128xf32>
    %cst_7 = arith.constant dense<0.000000e+00> : vector<16xf32>
    %10 = vector.multi_reduction <add>, %9, %cst_7 [1] : vector<16x128xf32> to vector<16xf32>
    %11 = vector.shape_cast %10 : vector<16xf32> to vector<16x1xf32>
    %12 = math.sqrt %11 : vector<16x1xf32>
    %cst_8 = arith.constant 9.99999993E-9 : f32
    %13 = vector.broadcast %cst_8 : f32 to vector<16x1xf32>
    %14 = arith.addf %12, %13 : vector<16x1xf32>
    %15 = tpu.reciprocal %14 {approx = true} : vector<16x1xf32> -> vector<16x1xf32>
    %16 = vector.broadcast %15 : vector<16x1xf32> to vector<16x128xf32>
    %17 = arith.mulf %8, %16 : vector<16x128xf32>
    %c0_9 = arith.constant 0 : index
    %c0_10 = arith.constant 0 : index
    %18 = vector.load %arg5[%c0_9, %c0_10] : memref<16x128xf32, #tpu.memory_space<vmem>>, vector<16x128xf32>
    tpu.vector_store %arg5[%c0_9, %c0_10], %17 {strides = array<i32>} : memref<16x128xf32, #tpu.memory_space<vmem>>, vector<16x128xf32>,
    return
  }
  func.func @transform_0(%arg0: i32) -> (i32, i32) {
    %c0_i32 = arith.constant 0 : i32
    %c0_i32_0 = arith.constant 0 : i32
    return %arg0, %c0_i32 : i32, i32
  }
  func.func @transform_1(%arg0: i32) -> (i32, i32) {
    %c0_i32 = arith.constant 0 : i32
    %c0_i32_0 = arith.constant 0 : i32
    %c0_i32_1 = arith.constant 0 : i32
    return %c0_i32, %c0_i32_0 : i32, i32
  }
  func.func @transform_2(%arg0: i32) -> (i32, i32) {
    %c0_i32 = arith.constant 0 : i32
    %c0_i32_0 = arith.constant 0 : i32
    %c0_i32_1 = arith.constant 0 : i32
    return %c0_i32, %c0_i32_0 : i32, i32
  }
  func.func @transform_3(%arg0: i32) -> (i32, i32) {
    %c0_i32 = arith.constant 0 : i32
    %c0_i32_0 = arith.constant 0 : i32
    %c0_i32_1 = arith.constant 0 : i32
    return %c0_i32, %c0_i32_0 : i32, i32
  }
  func.func @transform_4(%arg0: i32) -> (i32, i32) {
    %c0_i32 = arith.constant 0 : i32
    %c0_i32_0 = arith.constant 0 : i32
    return %arg0, %c0_i32 : i32, i32
  }
}

</mosaic_0001>

<llo_original>
// kernel: tpu_custom_call.1
$region0: #{tpu_custom_call.1}
  #allocation0 [shape = 'u32[]', space=smem, size = 0x4, offset = 0x4, fixed_abs, tag = 'smem constant byte address 0x4 - core index']
  #allocation1 [shape = 'u32[144,128]{1,0:T(1,128)}', space=vmem, size = 0x12000, scoped, tag = 'internal scratch']
  #allocation2 [shape = 'f32[1,1]{1,0:T(1,128)S(6)}', space=smem, size = 0x200, scoped, tag = 'scoped memory for tpu_custom_call.1']
  %s0 = inlined_call_operand.hbm [shape: bf16[16,256], index: 0, kind: input, shape index: {}]
  %s1 = inlined_call_operand.hbm [shape: bf16[256,128], index: 1, kind: input, shape index: {}]
  %s2 = inlined_call_operand.vmem [shape: f32[1,128], index: 2, kind: input, shape index: {}]
  %s3 = inlined_call_operand.<no memory space> [shape: f32[1,1], index: 3, kind: input, shape index: {}]
  %s4 = inlined_call_operand.hbm [shape: f32[16,128], index: 4, kind: output, shape index: {}]
  %s5 = sld [smem:[#allocation0]]
  $region34: #{tpu_custom_call.1} parent=0
    _
  %s7 = ssub.s32 1, %s5
  %s8 = scalar_select 0, %s7, %s5
  %9 = sst [smem:[#allocation2]] %s3
  $region1: #{tpu_custom_call.1} parent=0
    #allocation3 [shape = 'u8[8192]{0}', space=vmem, size = 0x2000, scoped, tag = 'input window, operand 0, single buffered']
    #allocation4 [shape = 's32[1]{0}', space=sflag, size = 0x4, scoped, tag = 'scoped memory for tpu_custom_call.1']
    #allocation5 [shape = 's32[1]{0}', space=sflag, size = 0x4, scoped, tag = 'scoped memory for tpu_custom_call.1']
    #allocation6 [shape = 'u8[65536]{0}', space=vmem, size = 0x10000, scoped, tag = 'input window, operand 1, single buffered']
    #allocation7 [shape = 's32[1]{0}', space=sflag, size = 0x4, scoped, tag = 'scoped memory for tpu_custom_call.1']
    #allocation8 [shape = 'u8[8192]{0}', space=vmem, size = 0x2000, scoped, tag = 'output window, operand 0, single buffered']
    %10 = vsyncpa [#allocation4], 0
    %11 = vsyncpa [#allocation7], 0
    %12 = vsyncpa [#allocation5], 0
    // Predicated region
    $region2: #{tpu_custom_call.1} parent=1 // pred_check
      _
    $region3: #{tpu_custom_call.1} parent=1 // pred_check_branch
      %14 = sbr.rel (0) target = $region5
    $region4: #{tpu_custom_call.1} parent=1 // pred_region
      %s16 = ssub.s32 256, 256
      %17 = vsyncadd [#allocation4], %s16
      %s18 = sshll.u32 [#allocation3], 4
      %s19 = int_to_ptr.vmem [resolvable:$true] %s18
      %24 = dma.hbm_to_vmem [thread:$0]  %s0, 256, %s19, [#allocation4], 128, 128, 8
    $region5: #{tpu_custom_call.1} parent=1 // pred_fallthru
      _
    // Predicated region
    $region6: #{tpu_custom_call.1} parent=1 // pred_check
      _
    $region7: #{tpu_custom_call.1} parent=1 // pred_check_branch
      %26 = sbr.rel (0) target = $region9
    $region8: #{tpu_custom_call.1} parent=1 // pred_region
      %s28 = ssub.s32 2048, 2048
      %29 = vsyncadd [#allocation7], %s28
      %s30 = sshll.u32 [#allocation6], 4
      %s31 = int_to_ptr.vmem [resolvable:$true] %s30
      %36 = dma.hbm_to_vmem [thread:$0]  %s1, 2048, %s31, [#allocation7], 64, 64, 4
    $region9: #{tpu_custom_call.1} parent=1 // pred_fallthru
      _
    // Predicated region
    $region10: #{tpu_custom_call.1} parent=1 // pred_check
      _
    $region11: #{tpu_custom_call.1} parent=1 // pred_check_branch
      %38 = sbr.rel (0) target = $region13
    $region12: #{tpu_custom_call.1} parent=1 // pred_region
      _
    $region13: #{tpu_custom_call.1} parent=1 // pred_fallthru
      _
    // Predicated region
    $region14: #{tpu_custom_call.1} parent=1 // pred_check
      _
    $region15: #{tpu_custom_call.1} parent=1 // pred_check_branch
      %40 = sbr.rel (0) target = $region17
    $region16: #{tpu_custom_call.1} parent=1 // pred_region
      _
    $region17: #{tpu_custom_call.1} parent=1 // pred_fallthru
      _
    // Predicated region
    $region18: #{tpu_custom_call.1} parent=1 // pred_check
      _
    $region19: #{tpu_custom_call.1} parent=1 // pred_check_branch
      %42 = sbr.rel (0) target = $region21
    $region20: #{tpu_custom_call.1} parent=1 // pred_region
      %43 = dma.done [#allocation4], 256
    $region21: #{tpu_custom_call.1} parent=1 // pred_fallthru
      _
    // Predicated region
    $region22: #{tpu_custom_call.1} parent=1 // pred_check
      _
    $region23: #{tpu_custom_call.1} parent=1 // pred_check_branch
      %45 = sbr.rel (0) target = $region25
    $region24: #{tpu_custom_call.1} parent=1 // pred_region
      %46 = dma.done [#allocation7], 2048
    $region25: #{tpu_custom_call.1} parent=1 // pred_fallthru
      _
    %v48 = vld [vmem:[#allocation3] sm:$0xff]
    %v49 = vld [vmem:[#allocation3 + $0x8] sm:$0xff]
    %v50 = vld [vmem:[#allocation6] sm:$0xf]
    %v51 = vld [vmem:[#allocation6 + $0x4] sm:$0xf]
    %v52 = vld [vmem:[#allocation6 + $0x8] sm:$0xf]
    %v53 = vld [vmem:[#allocation6 + $0xc] sm:$0xf]
    %v54 = vld [vmem:[#allocation6 + $0x10] sm:$0xf]
    %v55 = vld [vmem:[#allocation6 + $0x14] sm:$0xf]
    %v56 = vld [vmem:[#allocation6 + $0x18] sm:$0xf]
    %v57 = vld [vmem:[#allocation6 + $0x1c] sm:$0xf]
    %v58 = vld [vmem:[#allocation6 + $0x20] sm:$0xf]
    %v59 = vld [vmem:[#allocation6 + $0x24] sm:$0xf]
    %v60 = vld [vmem:[#allocation6 + $0x28] sm:$0xf]
    %v61 = vld [vmem:[#allocation6 + $0x2c] sm:$0xf]
    %v62 = vld [vmem:[#allocation6 + $0x30] sm:$0xf]
    %v63 = vld [vmem:[#allocation6 + $0x34] sm:$0xf]
    %v64 = vld [vmem:[#allocation6 + $0x38] sm:$0xf]
    %v65 = vld [vmem:[#allocation6 + $0x3c] sm:$0xf]
    %v66 = vld [vmem:[#allocation6 + $0x40] sm:$0xf]
    %v67 = vld [vmem:[#allocation6 + $0x44] sm:$0xf]
    %v68 = vld [vmem:[#allocation6 + $0x48] sm:$0xf]
    %v69 = vld [vmem:[#allocation6 + $0x4c] sm:$0xf]
    %v70 = vld [vmem:[#allocation6 + $0x50] sm:$0xf]
    %v71 = vld [vmem:[#allocation6 + $0x54] sm:$0xf]
    %v72 = vld [vmem:[#allocation6 + $0x58] sm:$0xf]
    %v73 = vld [vmem:[#allocation6 + $0x5c] sm:$0xf]
    %v74 = vld [vmem:[#allocation6 + $0x60] sm:$0xf]
    %v75 = vld [vmem:[#allocation6 + $0x64] sm:$0xf]
    %v76 = vld [vmem:[#allocation6 + $0x68] sm:$0xf]
    %v77 = vld [vmem:[#allocation6 + $0x6c] sm:$0xf]
    %v78 = vld [vmem:[#allocation6 + $0x70] sm:$0xf]
    %v79 = vld [vmem:[#allocation6 + $0x74] sm:$0xf]
    %v80 = vld [vmem:[#allocation6 + $0x78] sm:$0xf]
    %v81 = vld [vmem:[#allocation6 + $0x7c] sm:$0xf]
    %v84 = vunpack.c.l.b16 %v48
    %v85 = vunpack.c.h.b16 %v48
    %v86 = vunpack.c.l.b16 %v49
    %v87 = vunpack.c.h.b16 %v49
    %v88 = vpack.c.b16 %v86, %v84
    %v89 = vpack.c.b16 %v87, %v85
    %v124 = vunpack.c.l.b16 %v50
    %v125 = vunpack.c.l.b16 %v51
    %v126 = vunpack.c.l.b16 %v52
    %v127 = vunpack.c.l.b16 %v53
    %v128 = vunpack.c.l.b16 %v54
    %v129 = vunpack.c.l.b16 %v55
    %v130 = vunpack.c.l.b16 %v56
    %v131 = vunpack.c.l.b16 %v57
    %v132 = vunpack.c.l.b16 %v58
    %v133 = vunpack.c.l.b16 %v59
    %v134 = vunpack.c.l.b16 %v60
    %v135 = vunpack.c.l.b16 %v61
    %v136 = vunpack.c.l.b16 %v62
    %v137 = vunpack.c.l.b16 %v63
    %v138 = vunpack.c.l.b16 %v64
    %v139 = vunpack.c.l.b16 %v65
    %v140 = vunpack.c.l.b16 %v66
    %v141 = vunpack.c.l.b16 %v67
    %v142 = vunpack.c.l.b16 %v68
    %v143 = vunpack.c.l.b16 %v69
    %v144 = vunpack.c.l.b16 %v70
    %v145 = vunpack.c.l.b16 %v71
    %v146 = vunpack.c.l.b16 %v72
    %v147 = vunpack.c.l.b16 %v73
    %v148 = vunpack.c.l.b16 %v74
    %v149 = vunpack.c.l.b16 %v75
    %v150 = vunpack.c.l.b16 %v76
    %v151 = vunpack.c.l.b16 %v77
    %v152 = vunpack.c.l.b16 %v78
    %v153 = vunpack.c.l.b16 %v79
    %v154 = vunpack.c.l.b16 %v80
    %v155 = vunpack.c.l.b16 %v81
    %v156 = vpack.c.b16 %v125, %v124
    %v157 = vpack.c.b16 %v127, %v126
    %v158 = vpack.c.b16 %v129, %v128
    %v159 = vpack.c.b16 %v131, %v130
    %v160 = vpack.c.b16 %v133, %v132
    %v161 = vpack.c.b16 %v135, %v134
    %v162 = vpack.c.b16 %v137, %v136
    %v163 = vpack.c.b16 %v139, %v138
    %v164 = vpack.c.b16 %v141, %v140
    %v165 = vpack.c.b16 %v143, %v142
    %v166 = vpack.c.b16 %v145, %v144
    %v167 = vpack.c.b16 %v147, %v146
    %v168 = vpack.c.b16 %v149, %v148
    %v169 = vpack.c.b16 %v151, %v150
    %v170 = vpack.c.b16 %v153, %v152
    %v171 = vpack.c.b16 %v155, %v154
    %188 = vmatprep.subr.bf16.mxu0 0
    %189 = vmatpush1.bf16.msra.mxu0 %v163
    %190 = vmatprep.subr.bf16.mxu0 0
    %191 = vmatpush1.bf16.msra.mxu0 %v162
    %192 = vmatprep.subr.bf16.mxu0 0
    %193 = vmatpush1.bf16.msra.mxu0 %v161
    %194 = vmatprep.subr.bf16.mxu0 0
    %195 = vmatpush1.bf16.msra.mxu0 %v160
    %196 = vmatprep.subr.bf16.mxu0 0
    %197 = vmatpush1.bf16.msra.mxu0 %v159
    %198 = vmatprep.subr.bf16.mxu0 0
    %199 = vmatpush1.bf16.msra.mxu0 %v158
    %200 = vmatprep.subr.bf16.mxu0 0
    %201 = vmatpush1.bf16.msra.mxu0 %v157
    %202 = vmatprep.subr.bf16.mxu0 0
    %203 = vmatpush1.bf16.msra.mxu0 %v156
    %204 = vmatprep.subr.bf16.mxu0 0
    %205 = vmatpush2.bf16.msra.mxu0 %v171
    %206 = vmatprep.subr.bf16.mxu0 0
    %207 = vmatpush2.bf16.msra.mxu0 %v170
    %208 = vmatprep.subr.bf16.mxu0 0
    %209 = vmatpush2.bf16.msra.mxu0 %v169
    %210 = vmatprep.subr.bf16.mxu0 0
    %211 = vmatpush2.bf16.msra.mxu0 %v168
    %212 = vmatprep.subr.bf16.mxu0 0
    %213 = vmatpush2.bf16.msra.mxu0 %v167
    %214 = vmatprep.subr.bf16.mxu0 0
    %215 = vmatpush2.bf16.msra.mxu0 %v166
    %216 = vmatprep.subr.bf16.mxu0 0
    %217 = vmatpush2.bf16.msra.mxu0 %v165
    %218 = vmatprep.subr.bf16.mxu0 0
    %219 = vmatpush2.bf16.msra.mxu0 %v164
    %220 = vmatprep.mubr.bf16.mxu0 %v89
    %221 = vmatmul.mubr.bf16.gmra.mxu0 %v88
    %v222 = vpop.f32.mrf.mxu0
    %v223 = vadd.f32 0.0, %v222
    %v224 = vpop.f32.mrf.mxu0
    %v225 = vpop.f32.mrf.mxu0
    %v226 = vadd.f32 0.0, %v225
    %v227 = vpop.f32.mrf.mxu0
    %228 = vdwg.mxu0
    %s229 = sld [smem:[#allocation2]]
    %v230 = vstv %s229
    %v231 = vmul.f32 %v223, %v230
    %v232 = vmul.f32 %v226, %v230
    %v233 = vld [vmem:[%s2] sm:$0x1]
    %v235 = vlaneseq
    %v236 = vshrl.u32 %v235, 7
    %v237 = vsub.s32 0, %v236
    %v238 = vrot.slane %v233, %v237
    %v240 = vadd.f32 %v231, %v238
    %v241 = vadd.f32 %v232, %v238
    %v242 = vmul.f32 %v240, %v240
    %v243 = vmul.f32 %v241, %v241
    %244 = vadd.xlane.f32.xlu0 %v242
    %v245 = vpop.xlane.xlu0 %244
    %246 = vadd.xlane.f32.xlu0 %v243
    %v247 = vpop.xlane.xlu0 %246
    %v248 = vrsqrt.pop %v245
    %v249 = vmul.f32 %v245, %v248
    %vm250 = vcmp.eq.f32.partialorder %v245, inf
    %v251 = vsel %vm250, %v245, %v249
    %vm252 = vcmp.eq.f32.partialorder %v245, 0.0
    %v253 = vand.u32 %v245, 2147483648
    %v254 = vsel %vm252, %v253, %v251
    %v255 = vrsqrt.pop %v247
    %v256 = vmul.f32 %v247, %v255
    %vm257 = vcmp.eq.f32.partialorder %v247, inf
    %v258 = vsel %vm257, %v247, %v256
    %vm259 = vcmp.eq.f32.partialorder %v247, 0.0
    %v260 = vand.u32 %v247, 2147483648
    %v261 = vsel %vm259, %v260, %v258
    %v262 = vadd.f32 %v254, 1e-08
    %v263 = vadd.f32 %v261, 1e-08
    %v264 = vrcp.pop %v262
    %v265 = vrcp.pop %v263
    %v266 = vmul.f32 %v240, %v264
    %v267 = vmul.f32 %v241, %v265
    %268 = vst [vmem:[#allocation8] sm:$0xff] %v266
    %269 = vst [vmem:[#allocation8 + $0x8] sm:$0xff] %v267
    // Predicated region
    $region26: #{tpu_custom_call.1} parent=1 // pred_check
      _
    $region27: #{tpu_custom_call.1} parent=1 // pred_check_branch
      %271 = sbr.rel (0) target = $region29
    $region28: #{tpu_custom_call.1} parent=1 // pred_region
      %s273 = ssub.s32 256, 256
      %274 = vsyncadd [#allocation5], %s273
      %s275 = sshll.u32 [#allocation8], 4
      %s276 = int_to_ptr.vmem [resolvable:$true] %s275
      %281 = dma.vmem_to_hbm [thread:$0]  %s276, 256, %s4, [#allocation5], 128, 128, 8
    $region29: #{tpu_custom_call.1} parent=1 // pred_fallthru
      _
    // Predicated region
    $region30: #{tpu_custom_call.1} parent=1 // pred_check
      _
    $region31: #{tpu_custom_call.1} parent=1 // pred_check_branch
      %283 = sbr.rel (0) target = $region33
    $region32: #{tpu_custom_call.1} parent=1 // pred_region
      %284 = dma.done [#allocation5], 256
    $region33: #{tpu_custom_call.1} parent=1 // pred_fallthru
      _
    %285 = vsyncpa [#allocation4], 1
    %286 = vsyncpa [#allocation7], 1
    %287 = vsyncpa [#allocation5], 1

</llo_original>
